<compile_context>
chip_gen: v7x
topology: tpu7x:2x2x1
jax: 0.10.0
libtpu: 0.0.40
codegen_flags: <defaults>
</compile_context>

<pallas_src>
import functools

import jax
import jax.numpy as jnp
import numpy as np
from jax.experimental import pallas as pl
from jax.experimental.pallas import tpu as pltpu


# ----------------------------------------------------------------------------
# Small helpers.
# ----------------------------------------------------------------------------
def _cdiv(a, b):
    return -(-a // b)


def _round_up(a, b):
    return _cdiv(a, b) * b


@functools.lru_cache(maxsize=None)
def _vmem_limit_bytes():
    """Generation-aware scoped-VMEM limit: ~80% of per-core capacity, capped
    at 100 MiB.  v5e/v6e (128 MiB) -> 100 MiB, v7x (64 MiB) -> ~51 MiB.
    Falls back to a v7x-safe value if the hardware query is unavailable."""
    cap = 64 * 1024 * 1024
    try:
        info = pltpu.get_tpu_info()
        c = getattr(info, "vmem_capacity_bytes", None)
        if c:
            cap = int(c)
    except Exception:
        pass
    return min(int(cap * 0.8), 100 * 1024 * 1024)


def _pick_tile(dim, max_tile, align, min_blocks=1):
    """Tile size: multiple of `align`, <= max_tile (roughly), splitting the
    aligned dim into at least `min_blocks` blocks when it is large enough
    (keeps both v7x TensorCores busy on the 'parallel' row axis)."""
    dim_a = _round_up(max(dim, align), align)
    nb = max(_cdiv(dim_a, _round_up(max_tile, align)), min_blocks)
    nb = min(nb, dim_a // align)          # every block at least `align` wide
    return _round_up(_cdiv(dim_a, nb), align)


def _pad2d(x, rows, cols):
    r, c = x.shape
    if (r, c) == (rows, cols):
        return x
    return jnp.pad(x, ((0, rows - r), (0, cols - c)))


# ----------------------------------------------------------------------------
# Tiled matmul kernels (optionally fused bias-add on the final K step).
# The lhs tile is cast to the rhs dtype inside the kernel (no-op if equal),
# so f32 operands (x, adj) never need a wrapper-side convert pass.
# ----------------------------------------------------------------------------
def _matmul_kernel(a_ref, b_ref, o_ref, acc_ref):
    @pl.when(pl.program_id(2) == 0)
    def _():
        acc_ref[...] = jnp.zeros_like(acc_ref)

    a = a_ref[...]
    b = b_ref[...]
    if a.dtype != b.dtype:
        a = a.astype(b.dtype)
    acc_ref[...] += jnp.dot(a, b, preferred_element_type=jnp.float32)

    @pl.when(pl.program_id(2) == pl.num_programs(2) - 1)
    def _():
        o_ref[...] = acc_ref[...].astype(o_ref.dtype)


def _matmul_bias_kernel(a_ref, b_ref, bias_ref, o_ref, acc_ref):
    @pl.when(pl.program_id(2) == 0)
    def _():
        acc_ref[...] = jnp.zeros_like(acc_ref)

    a = a_ref[...]
    b = b_ref[...]
    if a.dtype != b.dtype:
        a = a.astype(b.dtype)
    acc_ref[...] += jnp.dot(a, b, preferred_element_type=jnp.float32)

    @pl.when(pl.program_id(2) == pl.num_programs(2) - 1)
    def _():
        o_ref[...] = (acc_ref[...] + bias_ref[...]).astype(o_ref.dtype)


def pallas_matmul(a, b, bias=None, *, tm=1024, tn=512, tk=1024,
                  compute_dtype=jnp.bfloat16, out_dtype=jnp.float32):
    """C = a @ b (+ bias).  a: (M, K), b: (K, N), bias: (N,) or None.

    The rhs (small) is cast to `compute_dtype` in the wrapper; the lhs is
    streamed in its original dtype and cast per-tile inside the kernel.
    Ragged dims are zero-padded to aligned tile multiples and sliced back.
    """
    M, K = a.shape
    K2, N = b.shape
    assert K == K2, "inner dimensions must match"

    if compute_dtype is not None and b.dtype != compute_dtype:
        b = b.astype(compute_dtype)

    tm_e = _pick_tile(M, tm, 16, min_blocks=2)    # 16-aligned rows (bf16 tiling),
    tn_e = _pick_tile(N, tn, 128)                 # >=2 row blocks for v7x megacore
    tk_e = _pick_tile(K, tk, 128)

    a_bpe = jnp.dtype(a.dtype).itemsize
    b_bpe = jnp.dtype(b.dtype).itemsize
    o_bpe = jnp.dtype(out_dtype).itemsize

    # VMEM-aware safety valve: shrink tiles if the double-buffered footprint
    # would exceed ~80% of the generation-specific limit (matters on v7x).
    budget = int(0.8 * _vmem_limit_bytes())

    def _footprint(tm_, tn_, tk_):
        buf = tm_ * tk_ * a_bpe + tk_ * tn_ * b_bpe + tm_ * tn_ * o_bpe
        if bias is not None:
            buf += tn_ * 4
        return 2 * buf + tm_ * tn_ * 4            # double buffers + f32 accumulator

    while _footprint(tm_e, tn_e, tk_e) > budget and tm_e >= 512 and tm_e % 32 == 0:
        tm_e //= 2
    while _footprint(tm_e, tn_e, tk_e) > budget and tk_e >= 512 and tk_e % 256 == 0:
        tk_e //= 2
    while _footprint(tm_e, tn_e, tk_e) > budget and tn_e >= 512 and tn_e % 256 == 0:
        tn_e //= 2

    Mp, Np, Kp = _round_up(M, tm_e), _round_up(N, tn_e), _round_up(K, tk_e)
    a_p = _pad2d(a, Mp, Kp)                       # no-op when already aligned
    b_p = _pad2d(b, Kp, Np)
    grid = (Mp // tm_e, Np // tn_e, Kp // tk_e)

    a_spec = pl.BlockSpec((tm_e, tk_e), lambda i, j, k: (i, k))
    b_spec = pl.BlockSpec((tk_e, tn_e), lambda i, j, k: (k, j))
    o_spec = pl.BlockSpec((tm_e, tn_e), lambda i, j, k: (i, j))

    if bias is None:
        kernel = _matmul_kernel
        in_specs = [a_spec, b_spec]
        operands = (a_p, b_p)
    else:
        kernel = _matmul_bias_kernel
        bias_p = _pad2d(jnp.asarray(bias, jnp.float32).reshape(1, N), 1, Np)
        in_specs = [a_spec, b_spec, pl.BlockSpec((1, tn_e), lambda i, j, k: (0, j))]
        operands = (a_p, b_p, bias_p)

    cost = pl.CostEstimate(
        flops=2 * Mp * Np * Kp,
        transcendentals=0,
        bytes_accessed=(Mp * Kp * a_bpe
                        + (Mp // tm_e) * Kp * Np * b_bpe
                        + Mp * Np * o_bpe),
    )

    out = pl.pallas_call(
        kernel,
        out_shape=jax.ShapeDtypeStruct((Mp, Np), out_dtype),
        grid_spec=pltpu.PrefetchScalarGridSpec(
            num_scalar_prefetch=0,
            grid=grid,
            in_specs=in_specs,
            out_specs=o_spec,
            scratch_shapes=[pltpu.VMEM((tm_e, tn_e), jnp.float32)],
        ),
        compiler_params=pltpu.CompilerParams(
            dimension_semantics=("parallel", "parallel", "arbitrary"),
            vmem_limit_bytes=_vmem_limit_bytes(),
        ),
        cost_estimate=cost,
    )(*operands)

    if (Mp, Np) != (M, N):
        out = out[:M, :N]
    return out


# ----------------------------------------------------------------------------
# GraphConvolution module (JAX/Pallas version).
# ----------------------------------------------------------------------------
class GraphConvolution:
    """GCN layer: output = adj @ (x @ W) (+ bias)."""

    def __init__(self, in_features, out_features, support=None, bias=False,
                 key=None, compute_dtype=jnp.bfloat16):
        if key is None:
            key = jax.random.PRNGKey(0)
        self.in_features = in_features
        self.out_features = out_features
        self.support = support            # kept for API parity; unused in forward
        self.compute_dtype = compute_dtype
        kw, kb = jax.random.split(key)
        init_range = np.sqrt(6.0 / (in_features + out_features))
        self.weight = jax.random.uniform(
            kw, (in_features, out_features), jnp.float32,
            minval=-init_range, maxval=init_range)
        if bias:
            stdv = 1.0 / np.sqrt(out_features)
            self.bias = jax.random.uniform(
                kb, (out_features,), jnp.float32, minval=-stdv, maxval=stdv)
        else:
            self.bias = None

    def __call__(self, x, adj):
        # TODO(synk): torch.spmm sparse operands are densified here (no native
        # sparse-matmul primitive in Pallas TPU); semantics identical for dense.
        x = jnp.asarray(x)
        adj = jnp.asarray(adj)
        if x.dtype != jnp.bfloat16:
            x = x.astype(jnp.float32)
        if adj.dtype != jnp.bfloat16:
            adj = adj.astype(jnp.float32)

        cdt = self.compute_dtype
        support_dtype = jnp.float32 if cdt is None else cdt
        # support = x @ W, written directly in the compute dtype (halves the
        # HBM traffic of the intermediate; no convert pass before matmul #2).
        support = pallas_matmul(x, self.weight, compute_dtype=cdt,
                                out_dtype=support_dtype,
                                tm=1024, tn=512, tk=1024)
        # output = adj @ support (+ bias).  adj stays in its HBM dtype (f32)
        # and each row tile is cast to bf16 inside the kernel; large row /
        # contraction tiles amortize per-step overhead given narrow F_out.
        return pallas_matmul(adj, support, self.bias, compute_dtype=cdt,
                             out_dtype=jnp.float32,
                             tm=2048, tn=512, tk=1024)


# ----------------------------------------------------------------------------
# Demo / correctness check.
# ----------------------------------------------------------------------------
def _ref_forward(x, adj, w, b, compute_dtype):
    """Reference with the same bf16-input / f32-accumulate numerics."""
    if compute_dtype is not None:
        xs, adjs, ws = (x.astype(compute_dtype), adj.astype(compute_dtype),
                        w.astype(compute_dtype))
    else:
        xs, adjs, ws = x, adj, w
    support = jnp.dot(xs, ws, preferred_element_type=jnp.float32)
    out = jnp.dot(adjs, support.astype(xs.dtype), preferred_element_type=jnp.float32)
    if b is not None:
        out = out + b
    return out


if __name__ == "__main__":
    key = jax.random.PRNGKey(0)
    k_x, k_adj, k_mod = jax.random.split(key, 3)

    # Small, deliberately non-128-aligned shapes to exercise the padding path.
    N = 200         # number of nodes
    F_IN = 96       # input feature dim
    F_OUT = 48      # output feature dim

    x = jax.random.normal(k_x, (N, F_IN), jnp.float32)
    # Row-normalized random adjacency (dense), like a normalized graph support.
    adj_raw = jax.random.uniform(k_adj, (N, N), jnp.float32)
    adj = adj_raw / jnp.sum(adj_raw, axis=1, keepdims=True)

    # 1) Default config (bias=False), bf16 compute.
    gcn = GraphConvolution(F_IN, F_OUT, support=adj, bias=False, key=k_mod)
    out = jax.block_until_ready(gcn(x, adj))
    ref = _ref_forward(x, adj, gcn.weight, None, gcn.compute_dtype)
    np.testing.assert_allclose(np.asarray(out), np.asarray(ref),
                               rtol=1e-2, atol=1e-2)

    # 2) Bias path.
    gcn_b = GraphConvolution(F_IN, F_OUT, support=adj, bias=True, key=k_mod)
    out_b = jax.block_until_ready(gcn_b(x, adj))
    ref_b = _ref_forward(x, adj, gcn_b.weight, gcn_b.bias, gcn_b.compute_dtype)
    np.testing.assert_allclose(np.asarray(out_b), np.asarray(ref_b),
                               rtol=1e-2, atol=1e-2)

    # 3) Full-f32 compute path (compute_dtype=None) against the exact f32 ref.
    gcn_f32 = GraphConvolution(F_IN, F_OUT, support=adj, bias=True, key=k_mod,
                               compute_dtype=None)
    out_f32 = jax.block_until_ready(gcn_f32(x, adj))
    ref_f32 = adj @ (x @ gcn_f32.weight) + gcn_f32.bias
    np.testing.assert_allclose(np.asarray(out_f32), np.asarray(ref_f32),
                               rtol=1e-4, atol=1e-4)

    print("KERNEL_OK")
</pallas_src>

<mosaic_0001>
module attributes {stable_mosaic.version = 11 : i64} {
  func.func @_matmul_kernel(%arg0: i32, %arg1: i32, %arg2: i32, %arg3: memref<112x128xf32, #tpu.memory_space<vmem>>, %arg4: memref<128x128xbf16, #tpu.memory_space<vmem>>, %arg5: memref<112x128xbf16, #tpu.memory_space<vmem>>, %arg6: memref<112x128xf32, #tpu.memory_space<vmem>>) attributes {dimension_semantics = [#tpu.dimension_semantics<parallel>, #tpu.dimension_semantics<parallel>, #tpu.dimension_semantics<arbitrary>], iteration_bounds = array<i64: 2, 1, 1>, scalar_prefetch = 0 : i64, scratch_operands = 1 : i64, tpu.core_type = #tpu.core_type<tc>, window_params = [{transform_indices = @transform_0, window_bounds = array<i64: 112, 128>}, {transform_indices = @transform_1, window_bounds = array<i64: 128, 128>}, {transform_indices = @transform_2, window_bounds = array<i64: 112, 128>}]} {
    %c0_i32 = arith.constant 0 : i32
    %0 = arith.cmpi eq, %arg2, %c0_i32 : i32
    %1 = arith.extui %0 : i1 to i32
    %c0_i32_0 = arith.constant 0 : i32
    %2 = arith.cmpi ne, %1, %c0_i32_0 : i32
    scf.if %2 {
      %cst_10 = arith.constant 0.000000e+00 : f32
      %13 = vector.broadcast %cst_10 : f32 to vector<112x128xf32>
      %c0_11 = arith.constant 0 : index
      %c0_12 = arith.constant 0 : index
      %14 = vector.load %arg6[%c0_11, %c0_12] : memref<112x128xf32, #tpu.memory_space<vmem>>, vector<112x128xf32>
      tpu.vector_store %arg6[%c0_11, %c0_12], %13 {strides = array<i32>} : memref<112x128xf32, #tpu.memory_space<vmem>>, vector<112x128xf32>,
    } else {
    }
    %c0 = arith.constant 0 : index
    %c0_1 = arith.constant 0 : index
    %3 = vector.load %arg3[%c0, %c0_1] : memref<112x128xf32, #tpu.memory_space<vmem>>, vector<112x128xf32>
    %c0_2 = arith.constant 0 : index
    %c0_3 = arith.constant 0 : index
    %4 = vector.load %arg4[%c0_2, %c0_3] : memref<128x128xbf16, #tpu.memory_space<vmem>>, vector<128x128xbf16>
    %5 = arith.truncf %3 : vector<112x128xf32> to vector<112x128xbf16>
    %c0_4 = arith.constant 0 : index
    %c0_5 = arith.constant 0 : index
    %6 = vector.load %arg6[%c0_4, %c0_5] : memref<112x128xf32, #tpu.memory_space<vmem>>, vector<112x128xf32>
    %cst = arith.constant dense<0.000000e+00> : vector<112x128xf32>
    %7 = tpu.matmul %5, %4, %cst {dimension_numbers = #tpu.dot_dimension_numbers<[1], [0], [0], [1], [0, 0, 1, 1], [], []>} : vector<112x128xbf16>, vector<128x128xbf16>, vector<112x128xf32> -> vector<112x128xf32>
    %8 = arith.addf %6, %7 : vector<112x128xf32>
    %c0_6 = arith.constant 0 : index
    %c0_7 = arith.constant 0 : index
    %9 = vector.load %arg6[%c0_6, %c0_7] : memref<112x128xf32, #tpu.memory_space<vmem>>, vector<112x128xf32>
    tpu.vector_store %arg6[%c0_6, %c0_7], %8 {strides = array<i32>} : memref<112x128xf32, #tpu.memory_space<vmem>>, vector<112x128xf32>,
    %c0_i32_8 = arith.constant 0 : i32
    %10 = arith.cmpi eq, %arg2, %c0_i32_8 : i32
    %11 = arith.extui %10 : i1 to i32
    %c0_i32_9 = arith.constant 0 : i32
    %12 = arith.cmpi ne, %11, %c0_i32_9 : i32
    scf.if %12 {
      %c0_10 = arith.constant 0 : index
      %c0_11 = arith.constant 0 : index
      %13 = vector.load %arg6[%c0_10, %c0_11] : memref<112x128xf32, #tpu.memory_space<vmem>>, vector<112x128xf32>
      %14 = arith.truncf %13 : vector<112x128xf32> to vector<112x128xbf16>
      %c0_12 = arith.constant 0 : index
      %c0_13 = arith.constant 0 : index
      %15 = vector.load %arg5[%c0_12, %c0_13] : memref<112x128xbf16, #tpu.memory_space<vmem>>, vector<112x128xbf16>
      tpu.vector_store %arg5[%c0_12, %c0_13], %14 {strides = array<i32>} : memref<112x128xbf16, #tpu.memory_space<vmem>>, vector<112x128xbf16>,
    } else {
    }
    return
  }
  func.func @transform_0(%arg0: i32, %arg1: i32, %arg2: i32) -> (i32, i32) {
    %c0_i32 = arith.constant 0 : i32
    return %arg0, %arg2 : i32, i32
  }
  func.func @transform_1(%arg0: i32, %arg1: i32, %arg2: i32) -> (i32, i32) {
    %c0_i32 = arith.constant 0 : i32
    return %arg2, %arg1 : i32, i32
  }
  func.func @transform_2(%arg0: i32, %arg1: i32, %arg2: i32) -> (i32, i32) {
    %c0_i32 = arith.constant 0 : i32
    return %arg0, %arg1 : i32, i32
  }
}

</mosaic_0001>

<llo_original>
// kernel: tpu_custom_call.1
$region0: #{tpu_custom_call.1}
  #allocation0 [shape = 'u32[]', space=smem, size = 0x4, offset = 0x4, fixed_abs, tag = 'smem constant byte address 0x4 - core index']
  #allocation1 [shape = 'u32[144,128]{1,0:T(1,128)}', space=vmem, size = 0x12000, scoped, tag = 'internal scratch']
  #allocation2 [shape = 'f32[112,128]{1,0:T(8,128)}', space=vmem, size = 0xe000, scoped, tag = 'scratch operand']
  %s0 = inlined_call_operand.hbm [shape: f32[224,128], index: 0, kind: input, shape index: {}]
  %s1 = inlined_call_operand.hbm [shape: bf16[128,128], index: 1, kind: input, shape index: {}]
  %s2 = inlined_call_operand.hbm [shape: bf16[224,128], index: 2, kind: output, shape index: {}]
  %s3 = sld [smem:[#allocation0]]
  $region57: #{tpu_custom_call.1} parent=0
    _
  %s5 = ssub.s32 1, %s3
  %s6 = scalar_select 0, %s5, %s3
  $region1: #{tpu_custom_call.1} parent=0
    #allocation3 [shape = 'u8[114688]{0}', space=vmem, size = 0x1c000, scoped, tag = 'input window, operand 0']
    #allocation4 [shape = 's32[2]{0}', space=sflag, size = 0x8, scoped, tag = 'scoped memory for tpu_custom_call.1']
    #allocation5 [shape = 's32[2]{0}', space=sflag, size = 0x8, scoped, tag = 'scoped memory for tpu_custom_call.1']
    #allocation6 [shape = 'u8[32768]{0}', space=vmem, size = 0x8000, scoped, tag = 'input window, operand 1, single buffered']
    #allocation7 [shape = 's32[1]{0}', space=sflag, size = 0x4, scoped, tag = 'scoped memory for tpu_custom_call.1']
    #allocation8 [shape = 'u8[57344]{0}', space=vmem, size = 0xe000, scoped, tag = 'output window, operand 0']
    %7 = vsyncpa [#allocation4], 0
    %s8 = scalar_lea.sflag [#allocation4], 1
    %9 = vsyncpa %s8, 0
    %10 = vsyncpa [#allocation7], 0
    %11 = vsyncpa [#allocation5], 0
    %s12 = scalar_lea.sflag [#allocation5], 1
    %13 = vsyncpa %s12, 0
    loop: start=0, step=1, limit=4
    $region2: #{tpu_custom_call.1} parent=1 // loop_pre_header
      _
    $region3: #{tpu_custom_call.1} parent=1 // loop_header
      %s15 = sphi 0, %s19
      %p16 = scmp.ge.s32.totalorder %s15, 4
      %s22 = sphi 0, %s41
      %s23 = sphi 0, %s37
      %s24 = sphi 0, %s33
      %s25 = sphi 0, %s22
      %s26 = sphi 0, %s23
      %s27 = sphi 0, %s24
      %s28 = sphi 0, %s25
      %s29 = sphi 0, %s26
      %s30 = sphi 0, %s27
      %s46 = sphi 0, %s48
      %s49 = sphi 0, %s46
      %s50 = sphi 0, %s49
      %s66 = sphi 0, %s50
      %s74 = sphi 0, %s76
      %s77 = sphi 0, %s74
      %s78 = sphi 0, %s77
      %s94 = sphi 0, %s78
      %s102 = sphi 0, %s104
      %s105 = sphi 0, %s102
      %s106 = sphi 0, %s105
      %s122 = sphi 0, %s106
    $region4: #{tpu_custom_call.1} parent=1 // loop_header_branch
      %18 = sbr.rel (%p16) target = $region8
    $region5: #{tpu_custom_call.1} parent=1 // loop_body
      %s20 = ssub.s32 %s15, 1
      %s21 = ssub.s32 %s15, 2
      %s31 = sadd.s32 1, %s24
      %p32 = scmp.ge.s32.totalorder %s31, 1
      %s33 = scalar_select %p32, 0, %s31
      %s34 = sadd.s32 1, %s23
      %s35 = scalar_select %p32, %s34, %s23
      %p36 = scmp.ge.s32.totalorder %s35, 1
      %s37 = scalar_select %p36, 0, %s35
      %s38 = sadd.s32 1, %s22
      %s39 = scalar_select %p36, %s38, %s22
      %p40 = scmp.ge.s32.totalorder %s39, 2
      %s41 = scalar_select %p40, 0, %s39
      %s42 = ssub.s32 %s22, %s41
      %s43 = ssub.s32 %s24, %s33
      %s44 = sor.u32 %s42, %s43
      %p45 = scmp.eq.s32.totalorder %s44, 0
      %s47 = sadd.s32 %s46, 1
      %s48 = scalar_select %p45, %s46, %s47
      %p51 = pneg %p45
      %p52 = scmp.eq.s32.totalorder %s15, 1
      %p53 = por %p51, %p52
      %p54 = scmp.ne.s32.totalorder %s46, %s49
      %p55 = scmp.eq.s32.totalorder %s15, 0
      %p56 = por %p54, %p55
      %p57 = scmp.ne.s32.totalorder %s46, %s49
      %p58 = scmp.eq.s32.totalorder %s20, 1
      %p59 = por %p57, %p58
      %p60 = scmp.ne.s32.totalorder %s49, %s50
      %p61 = scmp.eq.s32.totalorder %s20, 0
      %p62 = por %p60, %p61
      %p63 = scmp.ne.s32.totalorder %s49, %s50
      %p64 = scmp.eq.s32.totalorder %s21, 1
      %p65 = por %p63, %p64
      %p67 = scmp.ne.s32.totalorder %s50, %s66
      %p68 = scmp.eq.s32.totalorder %s21, 0
      %p69 = por %p67, %p68
      %s70 = ssub.s32 %s24, %s33
      %s71 = ssub.s32 %s23, %s37
      %s72 = sor.u32 %s70, %s71
      %p73 = scmp.eq.s32.totalorder %s72, 0
      %s75 = sadd.s32 %s74, 1
      %s76 = scalar_select %p73, %s74, %s75
      %p79 = pneg %p73
      %p80 = scmp.eq.s32.totalorder %s15, 1
      %p81 = por %p79, %p80
      %p82 = scmp.ne.s32.totalorder %s74, %s77
      %p83 = scmp.eq.s32.totalorder %s15, 0
      %p84 = por %p82, %p83
      %p85 = scmp.ne.s32.totalorder %s74, %s77
      %p86 = scmp.eq.s32.totalorder %s20, 1
      %p87 = por %p85, %p86
      %p88 = scmp.ne.s32.totalorder %s77, %s78
      %p89 = scmp.eq.s32.totalorder %s20, 0
      %p90 = por %p88, %p89
      %p91 = scmp.ne.s32.totalorder %s77, %s78
      %p92 = scmp.eq.s32.totalorder %s21, 1
      %p93 = por %p91, %p92
      %p95 = scmp.ne.s32.totalorder %s78, %s94
      %p96 = scmp.eq.s32.totalorder %s21, 0
      %p97 = por %p95, %p96
      %s98 = ssub.s32 %s22, %s41
      %s99 = ssub.s32 %s23, %s37
      %s100 = sor.u32 %s98, %s99
      %p101 = scmp.eq.s32.totalorder %s100, 0
      %s103 = sadd.s32 %s102, 1
      %s104 = scalar_select %p101, %s102, %s103
      %p107 = pneg %p101
      %p108 = scmp.eq.s32.totalorder %s15, 1
      %p109 = por %p107, %p108
      %p110 = scmp.ne.s32.totalorder %s102, %s105
      %p111 = scmp.eq.s32.totalorder %s15, 0
      %p112 = por %p110, %p111
      %p113 = scmp.ne.s32.totalorder %s102, %s105
      %p114 = scmp.eq.s32.totalorder %s20, 1
      %p115 = por %p113, %p114
      %p116 = scmp.ne.s32.totalorder %s105, %s106
      %p117 = scmp.eq.s32.totalorder %s20, 0
      %p118 = por %p116, %p117
      %p119 = scmp.ne.s32.totalorder %s105, %s106
      %p120 = scmp.eq.s32.totalorder %s21, 1
      %p121 = por %p119, %p120
      %p123 = scmp.ne.s32.totalorder %s106, %s122
      %p124 = scmp.eq.s32.totalorder %s21, 0
      %p125 = por %p123, %p124
      %p126 = scmp.le.s32.totalorder 1, %s15
      %p127 = scmp.lt.s32.totalorder %s15, 3
      %p128 = pnand %p126, %p127
      %p129 = pneg %p128
      // Predicated region
      $region9: #{tpu_custom_call.1} parent=5 // pred_check
        _
      $region10: #{tpu_custom_call.1} parent=5 // pred_check_branch
        %131 = sbr.rel (%p128) target = $region12
      $region11: #{tpu_custom_call.1} parent=5 // pred_region
        %s132 = ssub.s32 %s15, 1
        // Predicated region
        $region13: #{tpu_custom_call.1} parent=11 // pred_check
          %p133 = pneg %p90
        $region14: #{tpu_custom_call.1} parent=11 // pred_check_branch
          %135 = sbr.rel (%p133) target = $region16
        $region15: #{tpu_custom_call.1} parent=11 // pred_region
          %s136 = smul.u32 16, %s27
          %s138 = ssub.s32 1024, 1024
          %139 = vsyncadd [#allocation7], %s138
          %s140 = sadd.s32 %s26, %s136
          %s141 = smul.addr %s140, 64
          %s142 = scalar_lea.hbm %s1, %s141
          %s143 = sshll.u32 [#allocation6], 4
          %s144 = int_to_ptr.vmem [resolvable:$true] %s143
          %149 = dma.hbm_to_vmem [thread:$0]  %s142, 1024, %s144, [#allocation7], 64, 64, 4
        $region16: #{tpu_custom_call.1} parent=11 // pred_fallthru
          _
      $region12: #{tpu_custom_call.1} parent=5 // pred_fallthru
        _
      %p150 = scmp.lt.s32.totalorder %s15, 2
      // Predicated region
      $region17: #{tpu_custom_call.1} parent=5 // pred_check
        %p151 = pneg %p150
      $region18: #{tpu_custom_call.1} parent=5 // pred_check_branch
        %153 = sbr.rel (%p151) target = $region20
      $region19: #{tpu_custom_call.1} parent=5 // pred_region
        // Predicated region
        $region21: #{tpu_custom_call.1} parent=19 // pred_check
          %p154 = pneg %p56
        $region22: #{tpu_custom_call.1} parent=19 // pred_check_branch
          %156 = sbr.rel (%p154) target = $region24
        $region23: #{tpu_custom_call.1} parent=19 // pred_region
          %s157 = sand.u32 %s46, 1
          %s158 = scalar_lea.sflag [#allocation4], %s157
          %s159 = sand.u32 %s46, 1
          %s160 = smul.addr %s159, 112
          %s161 = scalar_lea.vmem [#allocation3], %s160
          %s162 = smul.u32 14, %s22
          %s164 = ssub.s32 1792, 1792
          %165 = vsyncadd %s158, %s164
          %s166 = sadd.s32 %s24, %s162
          %s167 = smul.addr %s166, 128
          %s168 = scalar_lea.hbm %s0, %s167
          %s169 = sshll.u32 %s161, 4
          %s170 = int_to_ptr.vmem [resolvable:$true] %s169
          %175 = dma.hbm_to_vmem [thread:$0]  %s168, 1792, %s170, %s158, 128, 128, 8
        $region24: #{tpu_custom_call.1} parent=19 // pred_fallthru
          _
      $region20: #{tpu_custom_call.1} parent=5 // pred_fallthru
        _
      %p176 = scmp.le.s32.totalorder 1, %s15
      %p177 = scmp.lt.s32.totalorder %s15, 3
      %p178 = pnand %p176, %p177
      %p179 = pneg %p178
      // Predicated region
      $region25: #{tpu_custom_call.1} parent=5 // pred_check
        _
      $region26: #{tpu_custom_call.1} parent=5 // pred_check_branch
        %181 = sbr.rel (%p178) target = $region28
      $region27: #{tpu_custom_call.1} parent=5 // pred_region
        %s182 = ssub.s32 %s15, 1
        %s183 = sand.u32 %s49, 1
        %s184 = scalar_lea.sflag [#allocation4], %s183
        %s185 = sand.u32 %s49, 1
        %s186 = smul.addr %s185, 112
        %s187 = scalar_lea.vmem [#allocation3], %s186
        // Predicated region
        $region29: #{tpu_custom_call.1} parent=27 // pred_check
          %p188 = pneg %p62
        $region30: #{tpu_custom_call.1} parent=27 // pred_check_branch
          %190 = sbr.rel (%p188) target = $region32
        $region31: #{tpu_custom_call.1} parent=27 // pred_region
          %191 = dma.done %s184, 1792
        $region32: #{tpu_custom_call.1} parent=27 // pred_fallthru
          _
        // Predicated region
        $region33: #{tpu_custom_call.1} parent=27 // pred_check
          %p192 = pneg %p90
        $region34: #{tpu_custom_call.1} parent=27 // pred_check_branch
          %194 = sbr.rel (%p192) target = $region36
        $region35: #{tpu_custom_call.1} parent=27 // pred_region
          %195 = dma.done [#allocation7], 1024
        $region36: #{tpu_custom_call.1} parent=27 // pred_fallthru
          _
        %s196 = sand.u32 %s49, 1
        %s197 = scalar_lea.sflag [#allocation4], %s196
        %s198 = sand.u32 %s49, 1
        %s199 = smul.addr %s198, 112
        %s200 = scalar_lea.vmem [#allocation3], %s199
        %p201 = pneg %p62
        %p202 = pneg %p59
        %p203 = pneg %p90
        %p204 = pneg %p87
        %p205 = pneg %p118
        %p206 = pneg %p115
        %s207 = sand.u32 %s105, 1
        %s208 = scalar_lea.sflag [#allocation5], %s207
        %s209 = sand.u32 %s105, 1
        %s210 = smul.addr %s209, 56
        %s211 = scalar_lea.vmem [#allocation8], %s210
        %s212 = smul.u32 14, %s25
        %s213 = smul.u32 16, %s27
        %s214 = smul.u32 14, %s25
        %p216 = scmp.eq.s32.totalorder %s27, 0
        // Predicated region
        $region37: #{tpu_custom_call.1} parent=27 // pred_check
          %p217 = pneg %p216
        $region38: #{tpu_custom_call.1} parent=27 // pred_check_branch
          %219 = sbr.rel (%p217) target = $region40
        $region39: #{tpu_custom_call.1} parent=27 // pred_region
          %220 = vst [vmem:[#allocation2] sm:$0xff] 0.0
          %221 = vst [vmem:[#allocation2 + $0x8] sm:$0xff] 0.0
          %222 = vst [vmem:[#allocation2 + $0x10] sm:$0xff] 0.0
          %223 = vst [vmem:[#allocation2 + $0x18] sm:$0xff] 0.0
          %224 = vst [vmem:[#allocation2 + $0x20] sm:$0xff] 0.0
          %225 = vst [vmem:[#allocation2 + $0x28] sm:$0xff] 0.0
          %226 = vst [vmem:[#allocation2 + $0x30] sm:$0xff] 0.0
          %227 = vst [vmem:[#allocation2 + $0x38] sm:$0xff] 0.0
          %228 = vst [vmem:[#allocation2 + $0x40] sm:$0xff] 0.0
          %229 = vst [vmem:[#allocation2 + $0x48] sm:$0xff] 0.0
          %230 = vst [vmem:[#allocation2 + $0x50] sm:$0xff] 0.0
          %231 = vst [vmem:[#allocation2 + $0x58] sm:$0xff] 0.0
          %232 = vst [vmem:[#allocation2 + $0x60] sm:$0xff] 0.0
          %233 = vst [vmem:[#allocation2 + $0x68] sm:$0xff] 0.0
        $region40: #{tpu_custom_call.1} parent=27 // pred_fallthru
          _
        %v234 = vld [vmem:[%s187] sm:$0xff]
        %v235 = vld [vmem:[%s187 + $0x8] sm:$0xff]
        %v236 = vld [vmem:[%s187 + $0x10] sm:$0xff]
        %v237 = vld [vmem:[%s187 + $0x18] sm:$0xff]
        %v238 = vld [vmem:[%s187 + $0x20] sm:$0xff]
        %v239 = vld [vmem:[%s187 + $0x28] sm:$0xff]
        %v240 = vld [vmem:[%s187 + $0x30] sm:$0xff]
        %v241 = vld [vmem:[%s187 + $0x38] sm:$0xff]
        %v242 = vld [vmem:[%s187 + $0x40] sm:$0xff]
        %v243 = vld [vmem:[%s187 + $0x48] sm:$0xff]
        %v244 = vld [vmem:[%s187 + $0x50] sm:$0xff]
        %v245 = vld [vmem:[%s187 + $0x58] sm:$0xff]
        %v246 = vld [vmem:[%s187 + $0x60] sm:$0xff]
        %v247 = vld [vmem:[%s187 + $0x68] sm:$0xff]
        %v248 = vld [vmem:[#allocation6] sm:$0xf]
        %v249 = vld [vmem:[#allocation6 + $0x4] sm:$0xf]
        %v250 = vld [vmem:[#allocation6 + $0x8] sm:$0xf]
        %v251 = vld [vmem:[#allocation6 + $0xc] sm:$0xf]
        %v252 = vld [vmem:[#allocation6 + $0x10] sm:$0xf]
        %v253 = vld [vmem:[#allocation6 + $0x14] sm:$0xf]
        %v254 = vld [vmem:[#allocation6 + $0x18] sm:$0xf]
        %v255 = vld [vmem:[#allocation6 + $0x1c] sm:$0xf]
        %v256 = vld [vmem:[#allocation6 + $0x20] sm:$0xf]
        %v257 = vld [vmem:[#allocation6 + $0x24] sm:$0xf]
        %v258 = vld [vmem:[#allocation6 + $0x28] sm:$0xf]
        %v259 = vld [vmem:[#allocation6 + $0x2c] sm:$0xf]
        %v260 = vld [vmem:[#allocation6 + $0x30] sm:$0xf]
        %v261 = vld [vmem:[#allocation6 + $0x34] sm:$0xf]
        %v262 = vld [vmem:[#allocation6 + $0x38] sm:$0xf]
        %v263 = vld [vmem:[#allocation6 + $0x3c] sm:$0xf]
        %v264 = vpack.c.bf16 %v235, %v234
        %v265 = vpack.c.bf16 %v237, %v236
        %v266 = vpack.c.bf16 %v239, %v238
        %v267 = vpack.c.bf16 %v241, %v240
        %v268 = vpack.c.bf16 %v243, %v242
        %v269 = vpack.c.bf16 %v245, %v244
        %v270 = vpack.c.bf16 %v247, %v246
        %v271 = vld [vmem:[#allocation2] sm:$0xff]
        %v272 = vld [vmem:[#allocation2 + $0x8] sm:$0xff]
        %v273 = vld [vmem:[#allocation2 + $0x10] sm:$0xff]
        %v274 = vld [vmem:[#allocation2 + $0x18] sm:$0xff]
        %v275 = vld [vmem:[#allocation2 + $0x20] sm:$0xff]
        %v276 = vld [vmem:[#allocation2 + $0x28] sm:$0xff]
        %v277 = vld [vmem:[#allocation2 + $0x30] sm:$0xff]
        %v278 = vld [vmem:[#allocation2 + $0x38] sm:$0xff]
        %v279 = vld [vmem:[#allocation2 + $0x40] sm:$0xff]
        %v280 = vld [vmem:[#allocation2 + $0x48] sm:$0xff]
        %v281 = vld [vmem:[#allocation2 + $0x50] sm:$0xff]
        %v282 = vld [vmem:[#allocation2 + $0x58] sm:$0xff]
        %v283 = vld [vmem:[#allocation2 + $0x60] sm:$0xff]
        %v284 = vld [vmem:[#allocation2 + $0x68] sm:$0xff]
        %v301 = vunpack.c.l.b16 %v248
        %v302 = vunpack.c.l.b16 %v249
        %v303 = vunpack.c.l.b16 %v250
        %v304 = vunpack.c.l.b16 %v251
        %v305 = vunpack.c.l.b16 %v252
        %v306 = vunpack.c.l.b16 %v253
        %v307 = vunpack.c.l.b16 %v254
        %v308 = vunpack.c.l.b16 %v255
        %v309 = vunpack.c.l.b16 %v256
        %v310 = vunpack.c.l.b16 %v257
        %v311 = vunpack.c.l.b16 %v258
        %v312 = vunpack.c.l.b16 %v259
        %v313 = vunpack.c.l.b16 %v260
        %v314 = vunpack.c.l.b16 %v261
        %v315 = vunpack.c.l.b16 %v262
        %v316 = vunpack.c.l.b16 %v263
        %v317 = vpack.c.b16 %v302, %v301
        %v318 = vpack.c.b16 %v304, %v303
        %v319 = vpack.c.b16 %v306, %v305
        %v320 = vpack.c.b16 %v308, %v307
        %v321 = vpack.c.b16 %v310, %v309
        %v322 = vpack.c.b16 %v312, %v311
        %v323 = vpack.c.b16 %v314, %v313
        %v324 = vpack.c.b16 %v316, %v315
        %333 = vmatprep.subr.bf16.mxu0 0
        %334 = vmatpush1.bf16.msra.mxu0 %v317
        %335 = vmatprep.subr.bf16.mxu0 0
        %336 = vmatpush1.bf16.msra.mxu0 %v318
        %337 = vmatprep.subr.bf16.mxu0 0
        %338 = vmatpush1.bf16.msra.mxu0 %v319
        %339 = vmatprep.subr.bf16.mxu0 0
        %340 = vmatpush1.bf16.msra.mxu0 %v320
        %341 = vmatprep.subr.bf16.mxu0 0
        %342 = vmatpush1.bf16.msra.mxu0 %v321
        %343 = vmatprep.subr.bf16.mxu0 0
        %344 = vmatpush1.bf16.msra.mxu0 %v322
        %345 = vmatprep.subr.bf16.mxu0 0
        %346 = vmatpush1.bf16.msra.mxu0 %v323
        %347 = vmatprep.subr.bf16.mxu0 0
        %348 = vmatpush1.bf16.msra.mxu0 %v324
        %349 = vmatprep.subr.bf16.mxu0 0
        %350 = vmatpush1.bf16.msra.mxu0 0
        %351 = vmatprep.subr.bf16.mxu0 0
        %352 = vmatpush1.bf16.msra.mxu0 0
        %353 = vmatprep.subr.bf16.mxu0 0
        %354 = vmatpush1.bf16.msra.mxu0 0
        %355 = vmatprep.subr.bf16.mxu0 0
        %356 = vmatpush1.bf16.msra.mxu0 0
        %357 = vmatprep.subr.bf16.mxu0 0
        %358 = vmatpush1.bf16.msra.mxu0 0
        %359 = vmatprep.subr.bf16.mxu0 0
        %360 = vmatpush1.bf16.msra.mxu0 0
        %361 = vmatprep.subr.bf16.mxu0 0
        %362 = vmatpush1.bf16.msra.mxu0 0
        %363 = vmatprep.subr.bf16.mxu0 0
        %364 = vmatpush1.bf16.msra.mxu0 0
        %365 = vmatprep.mubr.bf16.mxu0 0
        %366 = vmatmul.mubr.bf16.gmra.mrb[0].mxu0 %v264
        %v367 = vpop.f32.mrb[0].mxu0
        %v368 = vadd.f32 0.0, %v367
        %v369 = vpop.f32.mrb[0].mxu0
        %v370 = vpop.f32.mrb[0].mxu0
        %v371 = vadd.f32 0.0, %v370
        %v372 = vpop.f32.mrb[0].mxu0
        %373 = vmatprep.mubr.bf16.mxu0 0
        %374 = vmatmul.mubr.bf16.gmra.mrb[0].mxu0 %v265
        %v375 = vpop.f32.mrb[0].mxu0
        %v376 = vadd.f32 0.0, %v375
        %v377 = vpop.f32.mrb[0].mxu0
        %v378 = vpop.f32.mrb[0].mxu0
        %v379 = vadd.f32 0.0, %v378
        %v380 = vpop.f32.mrb[0].mxu0
        %381 = vmatprep.mubr.bf16.mxu0 0
        %382 = vmatmul.mubr.bf16.gmra.mrb[0].mxu0 %v266
        %v383 = vpop.f32.mrb[0].mxu0
        %v384 = vadd.f32 0.0, %v383
        %v385 = vpop.f32.mrb[0].mxu0
        %v386 = vpop.f32.mrb[0].mxu0
        %v387 = vadd.f32 0.0, %v386
        %v388 = vpop.f32.mrb[0].mxu0
        %389 = vmatprep.mubr.bf16.mxu0 0
        %390 = vmatmul.mubr.bf16.gmra.mrb[0].mxu0 %v267
        %v391 = vpop.f32.mrb[0].mxu0
        %v392 = vadd.f32 0.0, %v391
        %v393 = vpop.f32.mrb[0].mxu0
        %v394 = vpop.f32.mrb[0].mxu0
        %v395 = vadd.f32 0.0, %v394
        %v396 = vpop.f32.mrb[0].mxu0
        %397 = vmatprep.mubr.bf16.mxu0 0
        %398 = vmatmul.mubr.bf16.gmra.mrb[0].mxu0 %v268
        %v399 = vpop.f32.mrb[0].mxu0
        %v400 = vadd.f32 0.0, %v399
        %v401 = vpop.f32.mrb[0].mxu0
        %v402 = vpop.f32.mrb[0].mxu0
        %v403 = vadd.f32 0.0, %v402
        %v404 = vpop.f32.mrb[0].mxu0
        %405 = vmatprep.mubr.bf16.mxu0 0
        %406 = vmatmul.mubr.bf16.gmra.mrb[0].mxu0 %v269
        %v407 = vpop.f32.mrb[0].mxu0
        %v408 = vadd.f32 0.0, %v407
        %v409 = vpop.f32.mrb[0].mxu0
        %v410 = vpop.f32.mrb[0].mxu0
        %v411 = vadd.f32 0.0, %v410
        %v412 = vpop.f32.mrb[0].mxu0
        %413 = vmatprep.mubr.bf16.mxu0 0
        %414 = vmatmul.mubr.bf16.gmra.mrb[0].mxu0 %v270
        %v415 = vpop.f32.mrb[0].mxu0
        %v416 = vadd.f32 0.0, %v415
        %v417 = vpop.f32.mrb[0].mxu0
        %v418 = vpop.f32.mrb[0].mxu0
        %v419 = vadd.f32 0.0, %v418
        %v420 = vpop.f32.mrb[0].mxu0
        %421 = vdwg.mxu0
        %v422 = vadd.f32 %v271, %v368
        %v423 = vadd.f32 %v272, %v371
        %v424 = vadd.f32 %v273, %v376
        %v425 = vadd.f32 %v274, %v379
        %v426 = vadd.f32 %v275, %v384
        %v427 = vadd.f32 %v276, %v387
        %v428 = vadd.f32 %v277, %v392
        %v429 = vadd.f32 %v278, %v395
        %v430 = vadd.f32 %v279, %v400
        %v431 = vadd.f32 %v280, %v403
        %v432 = vadd.f32 %v281, %v408
        %v433 = vadd.f32 %v282, %v411
        %v434 = vadd.f32 %v283, %v416
        %v435 = vadd.f32 %v284, %v419
        %436 = vst [vmem:[#allocation2] sm:$0xff] %v422
        %437 = vst [vmem:[#allocation2 + $0x8] sm:$0xff] %v423
        %438 = vst [vmem:[#allocation2 + $0x10] sm:$0xff] %v424
        %439 = vst [vmem:[#allocation2 + $0x18] sm:$0xff] %v425
        %440 = vst [vmem:[#allocation2 + $0x20] sm:$0xff] %v426
        %441 = vst [vmem:[#allocation2 + $0x28] sm:$0xff] %v427
        %442 = vst [vmem:[#allocation2 + $0x30] sm:$0xff] %v428
        %443 = vst [vmem:[#allocation2 + $0x38] sm:$0xff] %v429
        %444 = vst [vmem:[#allocation2 + $0x40] sm:$0xff] %v430
        %445 = vst [vmem:[#allocation2 + $0x48] sm:$0xff] %v431
        %446 = vst [vmem:[#allocation2 + $0x50] sm:$0xff] %v432
        %447 = vst [vmem:[#allocation2 + $0x58] sm:$0xff] %v433
        %448 = vst [vmem:[#allocation2 + $0x60] sm:$0xff] %v434
        %449 = vst [vmem:[#allocation2 + $0x68] sm:$0xff] %v435
        // Predicated region
        $region41: #{tpu_custom_call.1} parent=27 // pred_check
          %p450 = pneg %p216
        $region42: #{tpu_custom_call.1} parent=27 // pred_check_branch
          %452 = sbr.rel (%p450) target = $region44
        $region43: #{tpu_custom_call.1} parent=27 // pred_region
          %v453 = vld [vmem:[#allocation2] sm:$0xff]
          %v454 = vld [vmem:[#allocation2 + $0x8] sm:$0xff]
          %v455 = vld [vmem:[#allocation2 + $0x10] sm:$0xff]
          %v456 = vld [vmem:[#allocation2 + $0x18] sm:$0xff]
          %v457 = vld [vmem:[#allocation2 + $0x20] sm:$0xff]
          %v458 = vld [vmem:[#allocation2 + $0x28] sm:$0xff]
          %v459 = vld [vmem:[#allocation2 + $0x30] sm:$0xff]
          %v460 = vld [vmem:[#allocation2 + $0x38] sm:$0xff]
          %v461 = vld [vmem:[#allocation2 + $0x40] sm:$0xff]
          %v462 = vld [vmem:[#allocation2 + $0x48] sm:$0xff]
          %v463 = vld [vmem:[#allocation2 + $0x50] sm:$0xff]
          %v464 = vld [vmem:[#allocation2 + $0x58] sm:$0xff]
          %v465 = vld [vmem:[#allocation2 + $0x60] sm:$0xff]
          %v466 = vld [vmem:[#allocation2 + $0x68] sm:$0xff]
          %v467 = vpack.c.bf16 %v454, %v453
          %v468 = vpack.c.bf16 %v456, %v455
          %v469 = vpack.c.bf16 %v458, %v457
          %v470 = vpack.c.bf16 %v460, %v459
          %v471 = vpack.c.bf16 %v462, %v461
          %v472 = vpack.c.bf16 %v464, %v463
          %v473 = vpack.c.bf16 %v466, %v465
          %v481 = vunpack.c.l.b16 %v467
          %v482 = vunpack.c.h.b16 %v467
          %v483 = vunpack.c.l.b16 %v468
          %v484 = vunpack.c.h.b16 %v468
          %v485 = vunpack.c.l.b16 %v469
          %v486 = vunpack.c.h.b16 %v469
          %v487 = vunpack.c.l.b16 %v470
          %v488 = vunpack.c.h.b16 %v470
          %v489 = vunpack.c.l.b16 %v471
          %v490 = vunpack.c.h.b16 %v471
          %v491 = vunpack.c.l.b16 %v472
          %v492 = vunpack.c.h.b16 %v472
          %v493 = vunpack.c.l.b16 %v473
          %v494 = vunpack.c.h.b16 %v473
          %v495 = vpack.c.b16 %v481, %v481
          %v496 = vpack.c.b16 %v482, %v482
          %v497 = vpack.c.b16 %v483, %v483
          %v498 = vpack.c.b16 %v484, %v484
          %v499 = vpack.c.b16 %v485, %v485
          %v500 = vpack.c.b16 %v486, %v486
          %v501 = vpack.c.b16 %v487, %v487
          %v502 = vpack.c.b16 %v488, %v488
          %v503 = vpack.c.b16 %v489, %v489
          %v504 = vpack.c.b16 %v490, %v490
          %v505 = vpack.c.b16 %v491, %v491
          %v506 = vpack.c.b16 %v492, %v492
          %v507 = vpack.c.b16 %v493, %v493
          %v508 = vpack.c.b16 %v494, %v494
          %523 = vst [vmem:[%s211] sm:$0xf] %v495
          %524 = vst [vmem:[%s211 + $0x4] sm:$0xf] %v496
          %525 = vst [vmem:[%s211 + $0x8] sm:$0xf] %v497
          %526 = vst [vmem:[%s211 + $0xc] sm:$0xf] %v498
          %527 = vst [vmem:[%s211 + $0x10] sm:$0xf] %v499
          %528 = vst [vmem:[%s211 + $0x14] sm:$0xf] %v500
          %529 = vst [vmem:[%s211 + $0x18] sm:$0xf] %v501
          %530 = vst [vmem:[%s211 + $0x1c] sm:$0xf] %v502
          %531 = vst [vmem:[%s211 + $0x20] sm:$0xf] %v503
          %532 = vst [vmem:[%s211 + $0x24] sm:$0xf] %v504
          %533 = vst [vmem:[%s211 + $0x28] sm:$0xf] %v505
          %534 = vst [vmem:[%s211 + $0x2c] sm:$0xf] %v506
          %535 = vst [vmem:[%s211 + $0x30] sm:$0xf] %v507
          %536 = vst [vmem:[%s211 + $0x34] sm:$0xf] %v508
        $region44: #{tpu_custom_call.1} parent=27 // pred_fallthru
          _
        %s537 = sand.u32 %s105, 1
        %s538 = scalar_lea.sflag [#allocation5], %s537
        %s539 = sand.u32 %s105, 1
        %s540 = smul.addr %s539, 56
        %s541 = scalar_lea.vmem [#allocation8], %s540
        // Predicated region
        $region45: #{tpu_custom_call.1} parent=27 // pred_check
          %p542 = pneg %p115
        $region46: #{tpu_custom_call.1} parent=27 // pred_check_branch
          %544 = sbr.rel (%p542) target = $region48
        $region47: #{tpu_custom_call.1} parent=27 // pred_region
          %s545 = smul.u32 14, %s25
          %s547 = ssub.s32 896, 896
          %548 = vsyncadd %s538, %s547
          %s549 = sadd.s32 %s26, %s545
          %s550 = smul.addr %s549, 64
          %s551 = scalar_lea.hbm %s2, %s550
          %s552 = sshll.u32 %s541, 4
          %s553 = int_to_ptr.vmem [resolvable:$true] %s552
          %558 = dma.vmem_to_hbm [thread:$0]  %s553, 896, %s551, %s538, 64, 64, 4
        $region48: #{tpu_custom_call.1} parent=27 // pred_fallthru
          _
      $region28: #{tpu_custom_call.1} parent=5 // pred_fallthru
        _
      %p559 = scmp.le.s32.totalorder 2, %s15
      // Predicated region
      $region49: #{tpu_custom_call.1} parent=5 // pred_check
        %p560 = pneg %p559
      $region50: #{tpu_custom_call.1} parent=5 // pred_check_branch
        %562 = sbr.rel (%p560) target = $region52
      $region51: #{tpu_custom_call.1} parent=5 // pred_region
        %s563 = ssub.s32 %s15, 2
        // Predicated region
        $region53: #{tpu_custom_call.1} parent=51 // pred_check
          %p564 = pneg %p121
        $region54: #{tpu_custom_call.1} parent=51 // pred_check_branch
          %566 = sbr.rel (%p564) target = $region56
        $region55: #{tpu_custom_call.1} parent=51 // pred_region
          %s567 = sand.u32 %s106, 1
          %s568 = scalar_lea.sflag [#allocation5], %s567
          %s569 = sand.u32 %s106, 1
          %s570 = smul.addr %s569, 56
          %s571 = scalar_lea.vmem [#allocation8], %s570
          %572 = dma.done %s568, 896
        $region56: #{tpu_custom_call.1} parent=51 // pred_fallthru
          _
      $region52: #{tpu_custom_call.1} parent=5 // pred_fallthru
        _
    $region6: #{tpu_custom_call.1} parent=1 // loop_footer
      %s19 = sadd.s32 1, %s15
    $region7: #{tpu_custom_call.1} parent=1 // loop_footer_branch
      %14 = sbr.rel target = $region3
    $region8: #{tpu_custom_call.1} parent=1 // loop_exit
      _
    %573 = vsyncpa [#allocation4], 1
    %s574 = scalar_lea.sflag [#allocation4], 1
    %575 = vsyncpa %s574, 1
    %576 = vsyncpa [#allocation7], 1
    %577 = vsyncpa [#allocation5], 1
    %s578 = scalar_lea.sflag [#allocation5], 1
    %579 = vsyncpa %s578, 1

</llo_original>
